<compile_context>
chip_gen: v5e
topology: v5e:2x2
jax: 0.10.0
libtpu: 0.0.40
codegen_flags: <defaults>
</compile_context>

<pallas_src>
import jax
import jax.numpy as jnp
from jax.experimental import pallas as pl
from jax.experimental.pallas import tpu as pltpu


def _round_up(x, m):
    return ((x + m - 1) // m) * m


# ---------------------------------------------------------------------------
# Kernels
# ---------------------------------------------------------------------------
def _agg_kernel_fused(hf_ref, w0f_ref, b0_ref, w1_ref, b1_ref, o_ref):
    # hf_ref : (tg, N_per*F_in) lane-dense flattened node features.
    # w0f_ref: (N_per*F_in, F_in) == tile(W0 / N_per, N_per) -> the per-graph
    #          node mean is fused into this matmul; f32 accumulation on MXU.
    z = jnp.dot(hf_ref[...], w0f_ref[...], preferred_element_type=jnp.float32)
    z = jnp.tanh(z + b0_ref[...])
    out = jnp.dot(z, w1_ref[...], preferred_element_type=jnp.float32) + b1_ref[...]
    o_ref[...] = out.astype(o_ref.dtype)


def _agg_kernel_sum(h_ref, w0_ref, b0_ref, w1_ref, b1_ref, o_ref):
    # Fallback when the fused weight would be too large to keep VMEM-resident.
    # h_ref: (tg, N_per, F_in); the 1/N_per mean scale is folded into w0.
    s = jnp.sum(h_ref[...].astype(jnp.float32), axis=1)          # (tg, F_in)
    z = jnp.tanh(jnp.dot(s, w0_ref[...], preferred_element_type=jnp.float32)
                 + b0_ref[...])
    out = jnp.dot(z, w1_ref[...], preferred_element_type=jnp.float32) + b1_ref[...]
    o_ref[...] = out.astype(o_ref.dtype)


# ---------------------------------------------------------------------------
# Tile-size selection (VMEM-accounted, layout-padding aware)
# ---------------------------------------------------------------------------
def _choose_tg(G, per_graph_vmem_bytes, const_vmem_bytes):
    """Graphs per block, sized against a conservative cross-chip VMEM budget."""
    if G <= 8:
        return G                                   # full-extent block, 1 step
    budget = 12 << 20                              # fits v5e's 16 MiB scoped default
    avail = max(budget - const_vmem_bytes, 1 << 20)
    max_tg = max(8, avail // (2 * per_graph_vmem_bytes))   # x2: double buffered
    tg = min(G, max_tg, 4096)
    if G >= 16:
        tg = min(tg, (G // 2 // 8) * 8)            # >=2 grid steps: pipelining + v7x megacore
    tg = max(8, (tg // 8) * 8)                     # sublane-dense blocks
    return tg


# ---------------------------------------------------------------------------
# Wrapper
# ---------------------------------------------------------------------------
def aggregation_forward(h, w0, b0, w1, b1, *, tg=None):
    """h: [G, N_per, F_in]; returns [G, F_out]."""
    G, N_per, F_in = h.shape
    F_out = w1.shape[1]
    itemsize = jnp.dtype(h.dtype).itemsize

    b0_2d = b0.astype(jnp.float32).reshape(1, F_in)
    b1_2d = b1.astype(jnp.float32).reshape(1, F_out)
    w1_f = w1.astype(jnp.float32)

    K = N_per * F_in
    out_row_bytes = _round_up(F_out, 128) * itemsize

    # Use the fused-weight form only while (K, F_in) comfortably stays in VMEM.
    fused_w_bytes = _round_up(K, 8) * _round_up(F_in, 128) * 4
    fuse = fused_w_bytes <= (4 << 20)

    if fuse:
        # Weight dtype matches bf16 inputs so the MXU (not the VPU) upconverts.
        w_dtype = h.dtype if h.dtype == jnp.bfloat16 else jnp.float32
        w0_fused = jnp.tile(w0.astype(jnp.float32) * (1.0 / N_per),
                            (N_per, 1)).astype(w_dtype)
        h_flat = h.reshape(G, K)                   # contiguous reshape: no copy

        const_bytes = 2 * (
            _round_up(K, 8) * _round_up(F_in, 128) * jnp.dtype(w_dtype).itemsize
            + 8 * _round_up(F_in, 128) * 4
            + _round_up(F_in, 8) * _round_up(F_out, 128) * 4
            + 8 * _round_up(F_out, 128) * 4)
        per_graph = _round_up(K, 128) * itemsize + out_row_bytes
        if tg is None:
            tg = _choose_tg(G, per_graph, const_bytes)

        return pl.pallas_call(
            _agg_kernel_fused,
            out_shape=jax.ShapeDtypeStruct((G, F_out), h.dtype),
            grid_spec=pltpu.PrefetchScalarGridSpec(
                num_scalar_prefetch=0,
                grid=(pl.cdiv(G, tg),),
                in_specs=[
                    pl.BlockSpec((tg, K), lambda g: (g, 0)),
                    pl.BlockSpec((K, F_in), lambda g: (0, 0)),
                    pl.BlockSpec((1, F_in), lambda g: (0, 0)),
                    pl.BlockSpec((F_in, F_out), lambda g: (0, 0)),
                    pl.BlockSpec((1, F_out), lambda g: (0, 0)),
                ],
                out_specs=pl.BlockSpec((tg, F_out), lambda g: (g, 0)),
            ),
            compiler_params=pltpu.CompilerParams(
                dimension_semantics=("parallel",),
            ),
        )(h_flat, w0_fused, b0_2d, w1_f, b1_2d)

    # ----- Fallback: explicit node-sum on the 3-D tile (huge N_per*F_in) -----
    w0_scaled = w0.astype(jnp.float32) * (1.0 / N_per)
    per_graph = (_round_up(N_per, 8) * _round_up(F_in, 128) * itemsize
                 + out_row_bytes)
    const_bytes = 2 * (
        _round_up(F_in, 8) * _round_up(F_in, 128) * 4
        + 8 * _round_up(F_in, 128) * 4
        + _round_up(F_in, 8) * _round_up(F_out, 128) * 4
        + 8 * _round_up(F_out, 128) * 4)
    if tg is None:
        tg = _choose_tg(G, per_graph, const_bytes)

    return pl.pallas_call(
        _agg_kernel_sum,
        out_shape=jax.ShapeDtypeStruct((G, F_out), h.dtype),
        grid_spec=pltpu.PrefetchScalarGridSpec(
            num_scalar_prefetch=0,
            grid=(pl.cdiv(G, tg),),
            in_specs=[
                pl.BlockSpec((tg, N_per, F_in), lambda g: (g, 0, 0)),
                pl.BlockSpec((F_in, F_in), lambda g: (0, 0)),
                pl.BlockSpec((1, F_in), lambda g: (0, 0)),
                pl.BlockSpec((F_in, F_out), lambda g: (0, 0)),
                pl.BlockSpec((1, F_out), lambda g: (0, 0)),
            ],
            out_specs=pl.BlockSpec((tg, F_out), lambda g: (g, 0)),
        ),
        compiler_params=pltpu.CompilerParams(
            dimension_semantics=("parallel",),
        ),
    )(h, w0_scaled, b0_2d, w1_f, b1_2d)


def aggregation_reference(h, w0, b0, w1, b1):
    m = jnp.mean(h.astype(jnp.float32), axis=1)                  # (G, F_in)
    z = jnp.tanh(m @ w0 + b0)
    return (z @ w1 + b1).astype(h.dtype)


if __name__ == "__main__":
    key = jax.random.PRNGKey(0)
    G, N_per, F_in, F_out = 64, 16, 32, 16

    k_h, k_w0, k_b0, k_w1, k_b1 = jax.random.split(key, 5)
    h = jax.random.normal(k_h, (G, N_per, F_in), dtype=jnp.float32)
    # deterministic parameter init matching torch: 0.01 * randn(shape)
    W0 = 0.01 * jax.random.normal(k_w0, (F_in, F_in), dtype=jnp.float32)
    B0 = 0.01 * jax.random.normal(k_b0, (F_in,), dtype=jnp.float32)
    W1 = 0.01 * jax.random.normal(k_w1, (F_in, F_out), dtype=jnp.float32)
    B1 = 0.01 * jax.random.normal(k_b1, (F_out,), dtype=jnp.float32)

    out = aggregation_forward(h, W0, B0, W1, B1)
    jax.block_until_ready(out)

    ref = aggregation_reference(h, W0, B0, W1, B1)
    assert out.shape == (G, F_out), f"bad shape {out.shape}"
    assert jnp.allclose(out, ref, atol=1e-5, rtol=1e-5), "mismatch vs reference"

    print("KERNEL_OK")
</pallas_src>

<mosaic_0001>
module attributes {stable_mosaic.version = 11 : i64} {
  func.func @_agg_kernel_fused(%arg0: i32, %arg1: memref<32x512xf32, #tpu.memory_space<vmem>>, %arg2: memref<512x32xf32, #tpu.memory_space<vmem>>, %arg3: memref<1x32xf32, #tpu.memory_space<vmem>>, %arg4: memref<32x16xf32, #tpu.memory_space<vmem>>, %arg5: memref<1x16xf32, #tpu.memory_space<vmem>>, %arg6: memref<32x16xf32, #tpu.memory_space<vmem>>) attributes {dimension_semantics = [#tpu.dimension_semantics<parallel>], iteration_bounds = array<i64: 2>, scalar_prefetch = 0 : i64, scratch_operands = 0 : i64, tpu.core_type = #tpu.core_type<tc>, window_params = [{transform_indices = @transform_0, window_bounds = array<i64: 32, 512>}, {pipeline_mode = #tpu.pipeline_mode<synchronous>, transform_indices = @transform_1, window_bounds = array<i64: 512, 32>}, {pipeline_mode = #tpu.pipeline_mode<synchronous>, transform_indices = @transform_2, window_bounds = array<i64: 1, 32>}, {pipeline_mode = #tpu.pipeline_mode<synchronous>, transform_indices = @transform_3, window_bounds = array<i64: 32, 16>}, {pipeline_mode = #tpu.pipeline_mode<synchronous>, transform_indices = @transform_4, window_bounds = array<i64: 1, 16>}, {transform_indices = @transform_5, window_bounds = array<i64: 32, 16>}]} {
    %c0 = arith.constant 0 : index
    %c0_0 = arith.constant 0 : index
    %0 = vector.load %arg1[%c0, %c0_0] : memref<32x512xf32, #tpu.memory_space<vmem>>, vector<32x512xf32>
    %c0_1 = arith.constant 0 : index
    %c0_2 = arith.constant 0 : index
    %1 = vector.load %arg2[%c0_1, %c0_2] : memref<512x32xf32, #tpu.memory_space<vmem>>, vector<512x32xf32>
    %cst = arith.constant dense<0.000000e+00> : vector<32x32xf32>
    %2 = tpu.matmul %0, %1, %cst {dimension_numbers = #tpu.dot_dimension_numbers<[1], [0], [0], [1], [0, 0, 1, 1], [], []>} : vector<32x512xf32>, vector<512x32xf32>, vector<32x32xf32> -> vector<32x32xf32>
    %c0_3 = arith.constant 0 : index
    %c0_4 = arith.constant 0 : index
    %3 = vector.load %arg3[%c0_3, %c0_4] : memref<1x32xf32, #tpu.memory_space<vmem>>, vector<1x32xf32>
    %4 = vector.broadcast %3 : vector<1x32xf32> to vector<32x32xf32>
    %5 = arith.addf %2, %4 : vector<32x32xf32>
    %6 = math.tanh %5 : vector<32x32xf32>
    %c0_5 = arith.constant 0 : index
    %c0_6 = arith.constant 0 : index
    %7 = vector.load %arg4[%c0_5, %c0_6] : memref<32x16xf32, #tpu.memory_space<vmem>>, vector<32x16xf32>
    %cst_7 = arith.constant dense<0.000000e+00> : vector<32x16xf32>
    %8 = tpu.matmul %6, %7, %cst_7 {dimension_numbers = #tpu.dot_dimension_numbers<[1], [0], [0], [1], [0, 0, 1, 1], [], []>} : vector<32x32xf32>, vector<32x16xf32>, vector<32x16xf32> -> vector<32x16xf32>
    %c0_8 = arith.constant 0 : index
    %c0_9 = arith.constant 0 : index
    %9 = vector.load %arg5[%c0_8, %c0_9] : memref<1x16xf32, #tpu.memory_space<vmem>>, vector<1x16xf32>
    %10 = vector.broadcast %9 : vector<1x16xf32> to vector<32x16xf32>
    %11 = arith.addf %8, %10 : vector<32x16xf32>
    %c0_10 = arith.constant 0 : index
    %c0_11 = arith.constant 0 : index
    %12 = vector.load %arg6[%c0_10, %c0_11] : memref<32x16xf32, #tpu.memory_space<vmem>>, vector<32x16xf32>
    tpu.vector_store %arg6[%c0_10, %c0_11], %11 {strides = array<i32>} : memref<32x16xf32, #tpu.memory_space<vmem>>, vector<32x16xf32>,
    return
  }
  func.func @transform_0(%arg0: i32) -> (i32, i32) {
    %c0_i32 = arith.constant 0 : i32
    %c0_i32_0 = arith.constant 0 : i32
    return %arg0, %c0_i32 : i32, i32
  }
  func.func @transform_1(%arg0: i32) -> (i32, i32) {
    %c0_i32 = arith.constant 0 : i32
    %c0_i32_0 = arith.constant 0 : i32
    %c0_i32_1 = arith.constant 0 : i32
    return %c0_i32, %c0_i32_0 : i32, i32
  }
  func.func @transform_2(%arg0: i32) -> (i32, i32) {
    %c0_i32 = arith.constant 0 : i32
    %c0_i32_0 = arith.constant 0 : i32
    %c0_i32_1 = arith.constant 0 : i32
    return %c0_i32, %c0_i32_0 : i32, i32
  }
  func.func @transform_3(%arg0: i32) -> (i32, i32) {
    %c0_i32 = arith.constant 0 : i32
    %c0_i32_0 = arith.constant 0 : i32
    %c0_i32_1 = arith.constant 0 : i32
    return %c0_i32, %c0_i32_0 : i32, i32
  }
  func.func @transform_4(%arg0: i32) -> (i32, i32) {
    %c0_i32 = arith.constant 0 : i32
    %c0_i32_0 = arith.constant 0 : i32
    %c0_i32_1 = arith.constant 0 : i32
    return %c0_i32, %c0_i32_0 : i32, i32
  }
  func.func @transform_5(%arg0: i32) -> (i32, i32) {
    %c0_i32 = arith.constant 0 : i32
    %c0_i32_0 = arith.constant 0 : i32
    return %arg0, %c0_i32 : i32, i32
  }
}

</mosaic_0001>

<llo_original>
// kernel: tpu_custom_call.1
$region0: #{tpu_custom_call.1}
  #allocation0 [shape = 'u32[]', space=smem, size = 0x4, offset = 0x4, fixed_abs, tag = 'smem constant byte address 0x4 - core index']
  #allocation1 [shape = 'u32[72,128]{1,0:T(1,128)}', space=vmem, size = 0x9000, scoped, tag = 'internal scratch']
  %s0 = inlined_call_operand.vmem [shape: f32[64,512], index: 0, kind: input, shape index: {}]
  %s1 = inlined_call_operand.vmem [shape: f32[512,32], index: 1, kind: input, shape index: {}]
  %s2 = inlined_call_operand.vmem [shape: f32[1,32], index: 2, kind: input, shape index: {}]
  %s3 = inlined_call_operand.vmem [shape: f32[32,16], index: 3, kind: input, shape index: {}]
  %s4 = inlined_call_operand.vmem [shape: f32[1,16], index: 4, kind: input, shape index: {}]
  %s5 = inlined_call_operand.vmem [shape: f32[64,16], index: 5, kind: output, shape index: {}]
  %s6 = sld [smem:[#allocation0]]
  $region53: #{tpu_custom_call.1} parent=0
    _
  %s8 = ssub.s32 1, %s6
  %s9 = scalar_select 0, %s8, %s6
  loop: start=0, step=1, limit=4
  $region2: #{tpu_custom_call.1} parent=0 // loop_pre_header
    _
  $region3: #{tpu_custom_call.1} parent=0 // loop_header
    %s11 = sphi 0, %s15
    %p12 = scmp.ge.s32.totalorder %s11, 4
    %s21 = sphi 0, %s23
    %s24 = sphi 0, %s21
    %s25 = sphi 0, %s24
    %s41 = sphi 0, %s25
    %s45 = sphi 0, %s45
    %s47 = sphi 0, %s45
    %s48 = sphi 0, %s47
    %s62 = sphi 0, %s48
    %s66 = sphi 0, %s66
    %s68 = sphi 0, %s66
    %s69 = sphi 0, %s68
    %s83 = sphi 0, %s69
    %s87 = sphi 0, %s87
    %s89 = sphi 0, %s87
    %s90 = sphi 0, %s89
    %s104 = sphi 0, %s90
    %s108 = sphi 0, %s108
    %s110 = sphi 0, %s108
    %s111 = sphi 0, %s110
    %s125 = sphi 0, %s111
    %s131 = sphi 0, %s133
    %s134 = sphi 0, %s131
    %s135 = sphi 0, %s134
    %s151 = sphi 0, %s135
  $region4: #{tpu_custom_call.1} parent=0 // loop_header_branch
    %14 = sbr.rel (%p12) target = $region8
  $region5: #{tpu_custom_call.1} parent=0 // loop_body
    %s16 = ssub.s32 %s11, 1
    %s17 = ssub.s32 %s11, 2
    %s18 = sadd.s32 %s11, 1
    %s19 = ssub.s32 %s11, %s18
    %p20 = scmp.eq.s32.totalorder %s19, 0
    %s22 = sadd.s32 %s21, 1
    %s23 = scalar_select %p20, %s21, %s22
    %p26 = pneg %p20
    %p27 = scmp.eq.s32.totalorder %s11, 1
    %p28 = por %p26, %p27
    %p29 = scmp.ne.s32.totalorder %s21, %s24
    %p30 = scmp.eq.s32.totalorder %s11, 0
    %p31 = por %p29, %p30
    %p32 = scmp.ne.s32.totalorder %s21, %s24
    %p33 = scmp.eq.s32.totalorder %s16, 1
    %p34 = por %p32, %p33
    %p35 = scmp.ne.s32.totalorder %s24, %s25
    %p36 = scmp.eq.s32.totalorder %s16, 0
    %p37 = por %p35, %p36
    %p38 = scmp.ne.s32.totalorder %s24, %s25
    %p39 = scmp.eq.s32.totalorder %s17, 1
    %p40 = por %p38, %p39
    %p42 = scmp.ne.s32.totalorder %s25, %s41
    %p43 = scmp.eq.s32.totalorder %s17, 0
    %p44 = por %p42, %p43
    %s46 = sadd.s32 %s45, 1
    %p49 = scmp.eq.s32.totalorder %s11, 1
    %p50 = scmp.ne.s32.totalorder %s45, %s47
    %p51 = scmp.eq.s32.totalorder %s11, 0
    %p52 = por %p50, %p51
    %p53 = scmp.ne.s32.totalorder %s45, %s47
    %p54 = scmp.eq.s32.totalorder %s16, 1
    %p55 = por %p53, %p54
    %p56 = scmp.ne.s32.totalorder %s47, %s48
    %p57 = scmp.eq.s32.totalorder %s16, 0
    %p58 = por %p56, %p57
    %p59 = scmp.ne.s32.totalorder %s47, %s48
    %p60 = scmp.eq.s32.totalorder %s17, 1
    %p61 = por %p59, %p60
    %p63 = scmp.ne.s32.totalorder %s48, %s62
    %p64 = scmp.eq.s32.totalorder %s17, 0
    %p65 = por %p63, %p64
    %s67 = sadd.s32 %s66, 1
    %p70 = scmp.eq.s32.totalorder %s11, 1
    %p71 = scmp.ne.s32.totalorder %s66, %s68
    %p72 = scmp.eq.s32.totalorder %s11, 0
    %p73 = por %p71, %p72
    %p74 = scmp.ne.s32.totalorder %s66, %s68
    %p75 = scmp.eq.s32.totalorder %s16, 1
    %p76 = por %p74, %p75
    %p77 = scmp.ne.s32.totalorder %s68, %s69
    %p78 = scmp.eq.s32.totalorder %s16, 0
    %p79 = por %p77, %p78
    %p80 = scmp.ne.s32.totalorder %s68, %s69
    %p81 = scmp.eq.s32.totalorder %s17, 1
    %p82 = por %p80, %p81
    %p84 = scmp.ne.s32.totalorder %s69, %s83
    %p85 = scmp.eq.s32.totalorder %s17, 0
    %p86 = por %p84, %p85
    %s88 = sadd.s32 %s87, 1
    %p91 = scmp.eq.s32.totalorder %s11, 1
    %p92 = scmp.ne.s32.totalorder %s87, %s89
    %p93 = scmp.eq.s32.totalorder %s11, 0
    %p94 = por %p92, %p93
    %p95 = scmp.ne.s32.totalorder %s87, %s89
    %p96 = scmp.eq.s32.totalorder %s16, 1
    %p97 = por %p95, %p96
    %p98 = scmp.ne.s32.totalorder %s89, %s90
    %p99 = scmp.eq.s32.totalorder %s16, 0
    %p100 = por %p98, %p99
    %p101 = scmp.ne.s32.totalorder %s89, %s90
    %p102 = scmp.eq.s32.totalorder %s17, 1
    %p103 = por %p101, %p102
    %p105 = scmp.ne.s32.totalorder %s90, %s104
    %p106 = scmp.eq.s32.totalorder %s17, 0
    %p107 = por %p105, %p106
    %s109 = sadd.s32 %s108, 1
    %p112 = scmp.eq.s32.totalorder %s11, 1
    %p113 = scmp.ne.s32.totalorder %s108, %s110
    %p114 = scmp.eq.s32.totalorder %s11, 0
    %p115 = por %p113, %p114
    %p116 = scmp.ne.s32.totalorder %s108, %s110
    %p117 = scmp.eq.s32.totalorder %s16, 1
    %p118 = por %p116, %p117
    %p119 = scmp.ne.s32.totalorder %s110, %s111
    %p120 = scmp.eq.s32.totalorder %s16, 0
    %p121 = por %p119, %p120
    %p122 = scmp.ne.s32.totalorder %s110, %s111
    %p123 = scmp.eq.s32.totalorder %s17, 1
    %p124 = por %p122, %p123
    %p126 = scmp.ne.s32.totalorder %s111, %s125
    %p127 = scmp.eq.s32.totalorder %s17, 0
    %p128 = por %p126, %p127
    %s129 = ssub.s32 %s11, %s18
    %p130 = scmp.eq.s32.totalorder %s129, 0
    %s132 = sadd.s32 %s131, 1
    %s133 = scalar_select %p130, %s131, %s132
    %p136 = pneg %p130
    %p137 = scmp.eq.s32.totalorder %s11, 1
    %p138 = por %p136, %p137
    %p139 = scmp.ne.s32.totalorder %s131, %s134
    %p140 = scmp.eq.s32.totalorder %s11, 0
    %p141 = por %p139, %p140
    %p142 = scmp.ne.s32.totalorder %s131, %s134
    %p143 = scmp.eq.s32.totalorder %s16, 1
    %p144 = por %p142, %p143
    %p145 = scmp.ne.s32.totalorder %s134, %s135
    %p146 = scmp.eq.s32.totalorder %s16, 0
    %p147 = por %p145, %p146
    %p148 = scmp.ne.s32.totalorder %s134, %s135
    %p149 = scmp.eq.s32.totalorder %s17, 1
    %p150 = por %p148, %p149
    %p152 = scmp.ne.s32.totalorder %s135, %s151
    %p153 = scmp.eq.s32.totalorder %s17, 0
    %p154 = por %p152, %p153
    %p155 = scmp.le.s32.totalorder 1, %s11
    %p156 = scmp.lt.s32.totalorder %s11, 3
    %p157 = pnand %p155, %p156
    %p158 = pneg %p157
    // Predicated region
    $region9: #{tpu_custom_call.1} parent=5 // pred_check
      _
    $region10: #{tpu_custom_call.1} parent=5 // pred_check_branch
      %160 = sbr.rel (%p157) target = $region12
    $region11: #{tpu_custom_call.1} parent=5 // pred_region
      %s161 = ssub.s32 %s11, 1
      // Predicated region
      $region13: #{tpu_custom_call.1} parent=11 // pred_check
        %p162 = pneg %p58
      $region14: #{tpu_custom_call.1} parent=11 // pred_check_branch
        %164 = sbr.rel (%p162) target = $region16
      $region15: #{tpu_custom_call.1} parent=11 // pred_region
        _
      $region16: #{tpu_custom_call.1} parent=11 // pred_fallthru
        _
      // Predicated region
      $region17: #{tpu_custom_call.1} parent=11 // pred_check
        %p165 = pneg %p79
      $region18: #{tpu_custom_call.1} parent=11 // pred_check_branch
        %167 = sbr.rel (%p165) target = $region20
      $region19: #{tpu_custom_call.1} parent=11 // pred_region
        _
      $region20: #{tpu_custom_call.1} parent=11 // pred_fallthru
        _
      // Predicated region
      $region21: #{tpu_custom_call.1} parent=11 // pred_check
        %p168 = pneg %p100
      $region22: #{tpu_custom_call.1} parent=11 // pred_check_branch
        %170 = sbr.rel (%p168) target = $region24
      $region23: #{tpu_custom_call.1} parent=11 // pred_region
        _
      $region24: #{tpu_custom_call.1} parent=11 // pred_fallthru
        _
      // Predicated region
      $region25: #{tpu_custom_call.1} parent=11 // pred_check
        %p171 = pneg %p121
      $region26: #{tpu_custom_call.1} parent=11 // pred_check_branch
        %173 = sbr.rel (%p171) target = $region28
      $region27: #{tpu_custom_call.1} parent=11 // pred_region
        _
      $region28: #{tpu_custom_call.1} parent=11 // pred_fallthru
        _
    $region12: #{tpu_custom_call.1} parent=5 // pred_fallthru
      _
    %p174 = scmp.lt.s32.totalorder %s11, 2
    // Predicated region
    $region29: #{tpu_custom_call.1} parent=5 // pred_check
      %p175 = pneg %p174
    $region30: #{tpu_custom_call.1} parent=5 // pred_check_branch
      %177 = sbr.rel (%p175) target = $region32
    $region31: #{tpu_custom_call.1} parent=5 // pred_region
      // Predicated region
      $region33: #{tpu_custom_call.1} parent=31 // pred_check
        %p178 = pneg %p31
      $region34: #{tpu_custom_call.1} parent=31 // pred_check_branch
        %180 = sbr.rel (%p178) target = $region36
      $region35: #{tpu_custom_call.1} parent=31 // pred_region
        %s181 = smul.u32 4, %s11
        %p182 = scmp.lt.s32.totalorder %s181, 7
        %s183 = scalar_select %p182, %s181, 7
        %s184 = smul.addr %s183, 4
        %s185 = smul.addr %s184, 8
        %s186 = scalar_lea.vmem %s0, %s185
        %s187 = smul.u32 4, %s11
      $region36: #{tpu_custom_call.1} parent=31 // pred_fallthru
        _
    $region32: #{tpu_custom_call.1} parent=5 // pred_fallthru
      _
    %p188 = scmp.le.s32.totalorder 1, %s11
    %p189 = scmp.lt.s32.totalorder %s11, 3
    %p190 = pnand %p188, %p189
    %p191 = pneg %p190
    // Predicated region
    $region37: #{tpu_custom_call.1} parent=5 // pred_check
      _
    $region38: #{tpu_custom_call.1} parent=5 // pred_check_branch
      %193 = sbr.rel (%p190) target = $region40
    $region39: #{tpu_custom_call.1} parent=5 // pred_region
      %s194 = ssub.s32 %s11, 1
      %s195 = smul.u32 4, %s16
      %p196 = scmp.lt.s32.totalorder %s195, 7
      %s197 = scalar_select %p196, %s195, 7
      %s198 = smul.addr %s197, 4
      %s199 = smul.addr %s198, 8
      %s200 = scalar_lea.vmem %s0, %s199
      %p201 = pneg %p37
      %p202 = pneg %p34
      %p203 = pneg %p58
      %p204 = pneg %p55
      %p205 = pneg %p79
      %p206 = pneg %p76
      %p207 = pneg %p100
      %p208 = pneg %p97
      %p209 = pneg %p121
      %p210 = pneg %p118
      %p211 = pneg %p147
      %p212 = pneg %p144
      %s213 = smul.u32 4, %s16
      %p214 = scmp.lt.s32.totalorder %s213, 7
      %s215 = scalar_select %p214, %s213, 7
      %s216 = smul.addr %s215, 8
      %s217 = scalar_lea.vmem %s5, %s216
      %s218 = smul.u32 4, %s16
      %p219 = scmp.lt.s32.totalorder %s218, 7
      %s220 = scalar_select %p219, %s218, 7
      %s221 = smul.addr %s220, 4
      %s222 = smul.addr %s221, 8
      %s223 = scalar_lea.vmem %s0, %s222
      %s224 = smul.u32 4, %s16
      %s225 = smul.u32 4, %s16
      %p226 = scmp.lt.s32.totalorder %s225, 7
      %s227 = scalar_select %p226, %s225, 7
      %s228 = smul.addr %s227, 8
      %s229 = scalar_lea.vmem %s5, %s228
      %s230 = smul.u32 4, %s16
      %v231 = vld [vmem:[%s223] sm:$0xff]
      %v232 = vld [vmem:[%s223 + $0x8] sm:$0xff]
      %v233 = vld [vmem:[%s223 + $0x10] sm:$0xff]
      %v234 = vld [vmem:[%s223 + $0x18] sm:$0xff]
      %v235 = vld [vmem:[%s223 + $0x20] sm:$0xff]
      %v236 = vld [vmem:[%s223 + $0x28] sm:$0xff]
      %v237 = vld [vmem:[%s223 + $0x30] sm:$0xff]
      %v238 = vld [vmem:[%s223 + $0x38] sm:$0xff]
      %v239 = vld [vmem:[%s223 + $0x40] sm:$0xff]
      %v240 = vld [vmem:[%s223 + $0x48] sm:$0xff]
      %v241 = vld [vmem:[%s223 + $0x50] sm:$0xff]
      %v242 = vld [vmem:[%s223 + $0x58] sm:$0xff]
      %v243 = vld [vmem:[%s223 + $0x60] sm:$0xff]
      %v244 = vld [vmem:[%s223 + $0x68] sm:$0xff]
      %v245 = vld [vmem:[%s223 + $0x70] sm:$0xff]
      %v246 = vld [vmem:[%s223 + $0x78] sm:$0xff]
      %v247 = vld [vmem:[%s1] sm:$0xff]
      %v248 = vld [vmem:[%s1 + $0x8] sm:$0xff]
      %v249 = vld [vmem:[%s1 + $0x10] sm:$0xff]
      %v250 = vld [vmem:[%s1 + $0x18] sm:$0xff]
      %v251 = vld [vmem:[%s1 + $0x20] sm:$0xff]
      %v252 = vld [vmem:[%s1 + $0x28] sm:$0xff]
      %v253 = vld [vmem:[%s1 + $0x30] sm:$0xff]
      %v254 = vld [vmem:[%s1 + $0x38] sm:$0xff]
      %v255 = vld [vmem:[%s1 + $0x40] sm:$0xff]
      %v256 = vld [vmem:[%s1 + $0x48] sm:$0xff]
      %v257 = vld [vmem:[%s1 + $0x50] sm:$0xff]
      %v258 = vld [vmem:[%s1 + $0x58] sm:$0xff]
      %v259 = vld [vmem:[%s1 + $0x60] sm:$0xff]
      %v260 = vld [vmem:[%s1 + $0x68] sm:$0xff]
      %v261 = vld [vmem:[%s1 + $0x70] sm:$0xff]
      %v262 = vld [vmem:[%s1 + $0x78] sm:$0xff]
      %v263 = vld [vmem:[%s1 + $0x80] sm:$0xff]
      %v264 = vld [vmem:[%s1 + $0x88] sm:$0xff]
      %v265 = vld [vmem:[%s1 + $0x90] sm:$0xff]
      %v266 = vld [vmem:[%s1 + $0x98] sm:$0xff]
      %v267 = vld [vmem:[%s1 + $0xa0] sm:$0xff]
      %v268 = vld [vmem:[%s1 + $0xa8] sm:$0xff]
      %v269 = vld [vmem:[%s1 + $0xb0] sm:$0xff]
      %v270 = vld [vmem:[%s1 + $0xb8] sm:$0xff]
      %v271 = vld [vmem:[%s1 + $0xc0] sm:$0xff]
      %v272 = vld [vmem:[%s1 + $0xc8] sm:$0xff]
      %v273 = vld [vmem:[%s1 + $0xd0] sm:$0xff]
      %v274 = vld [vmem:[%s1 + $0xd8] sm:$0xff]
      %v275 = vld [vmem:[%s1 + $0xe0] sm:$0xff]
      %v276 = vld [vmem:[%s1 + $0xe8] sm:$0xff]
      %v277 = vld [vmem:[%s1 + $0xf0] sm:$0xff]
      %v278 = vld [vmem:[%s1 + $0xf8] sm:$0xff]
      %v279 = vld [vmem:[%s1 + $0x100] sm:$0xff]
      %v280 = vld [vmem:[%s1 + $0x108] sm:$0xff]
      %v281 = vld [vmem:[%s1 + $0x110] sm:$0xff]
      %v282 = vld [vmem:[%s1 + $0x118] sm:$0xff]
      %v283 = vld [vmem:[%s1 + $0x120] sm:$0xff]
      %v284 = vld [vmem:[%s1 + $0x128] sm:$0xff]
      %v285 = vld [vmem:[%s1 + $0x130] sm:$0xff]
      %v286 = vld [vmem:[%s1 + $0x138] sm:$0xff]
      %v287 = vld [vmem:[%s1 + $0x140] sm:$0xff]
      %v288 = vld [vmem:[%s1 + $0x148] sm:$0xff]
      %v289 = vld [vmem:[%s1 + $0x150] sm:$0xff]
      %v290 = vld [vmem:[%s1 + $0x158] sm:$0xff]
      %v291 = vld [vmem:[%s1 + $0x160] sm:$0xff]
      %v292 = vld [vmem:[%s1 + $0x168] sm:$0xff]
      %v293 = vld [vmem:[%s1 + $0x170] sm:$0xff]
      %v294 = vld [vmem:[%s1 + $0x178] sm:$0xff]
      %v295 = vld [vmem:[%s1 + $0x180] sm:$0xff]
      %v296 = vld [vmem:[%s1 + $0x188] sm:$0xff]
      %v297 = vld [vmem:[%s1 + $0x190] sm:$0xff]
      %v298 = vld [vmem:[%s1 + $0x198] sm:$0xff]
      %v299 = vld [vmem:[%s1 + $0x1a0] sm:$0xff]
      %v300 = vld [vmem:[%s1 + $0x1a8] sm:$0xff]
      %v301 = vld [vmem:[%s1 + $0x1b0] sm:$0xff]
      %v302 = vld [vmem:[%s1 + $0x1b8] sm:$0xff]
      %v303 = vld [vmem:[%s1 + $0x1c0] sm:$0xff]
      %v304 = vld [vmem:[%s1 + $0x1c8] sm:$0xff]
      %v305 = vld [vmem:[%s1 + $0x1d0] sm:$0xff]
      %v306 = vld [vmem:[%s1 + $0x1d8] sm:$0xff]
      %v307 = vld [vmem:[%s1 + $0x1e0] sm:$0xff]
      %v308 = vld [vmem:[%s1 + $0x1e8] sm:$0xff]
      %v309 = vld [vmem:[%s1 + $0x1f0] sm:$0xff]
      %v310 = vld [vmem:[%s1 + $0x1f8] sm:$0xff]
      %v311 = vld [vmem:[%s2] sm:$0x1]
      %v313 = vperm.slane %v311, 0
      %315 = vmatpush.msra.mxu0 %v262
      %316 = vmatpush.msra.mxu0 %v261
      %317 = vmatpush.msra.mxu0 %v260
      %318 = vmatpush.msra.mxu0 %v259
      %319 = vmatpush.msra.mxu0 %v258
      %320 = vmatpush.msra.mxu0 %v257
      %321 = vmatpush.msra.mxu0 %v256
      %322 = vmatpush.msra.mxu0 %v255
      %323 = vmatpush.msra.mxu0 %v254
      %324 = vmatpush.msra.mxu0 %v253
      %325 = vmatpush.msra.mxu0 %v252
      %326 = vmatpush.msra.mxu0 %v251
      %327 = vmatpush.msra.mxu0 %v250
      %328 = vmatpush.msra.mxu0 %v249
      %329 = vmatpush.msra.mxu0 %v248
      %330 = vmatpush.msra.mxu0 %v247
      %331 = vmatmul.f32.gmra.mxu0 %v231
      %v332 = vpop.f32.mrf.mxu0
      %v333 = vadd.f32 %v313, %v332
      %334 = vmatmul.f32.gmra.mxu0 %v235
      %v335 = vpop.f32.mrf.mxu0
      %v336 = vadd.f32 %v313, %v335
      %337 = vmatmul.f32.gmra.mxu0 %v239
      %v338 = vpop.f32.mrf.mxu0
      %v339 = vadd.f32 %v313, %v338
      %340 = vmatmul.f32.gmra.mxu0 %v243
      %v341 = vpop.f32.mrf.mxu0
      %v342 = vadd.f32 %v313, %v341
      %343 = vdwg.mxu0
      %344 = vmatpush.msra.mxu0 %v278
      %345 = vmatpush.msra.mxu0 %v277
      %346 = vmatpush.msra.mxu0 %v276
      %347 = vmatpush.msra.mxu0 %v275
      %348 = vmatpush.msra.mxu0 %v274
      %349 = vmatpush.msra.mxu0 %v273
      %350 = vmatpush.msra.mxu0 %v272
      %351 = vmatpush.msra.mxu0 %v271
      %352 = vmatpush.msra.mxu0 %v270
      %353 = vmatpush.msra.mxu0 %v269
      %354 = vmatpush.msra.mxu0 %v268
      %355 = vmatpush.msra.mxu0 %v267
      %356 = vmatpush.msra.mxu0 %v266
      %357 = vmatpush.msra.mxu0 %v265
      %358 = vmatpush.msra.mxu0 %v264
      %359 = vmatpush.msra.mxu0 %v263
      %360 = vmatmul.f32.gmra.mxu0 %v232
      %v361 = vpop.f32.mrf.mxu0
      %v362 = vadd.f32 %v333, %v361
      %363 = vmatmul.f32.gmra.mxu0 %v236
      %v364 = vpop.f32.mrf.mxu0
      %v365 = vadd.f32 %v336, %v364
      %366 = vmatmul.f32.gmra.mxu0 %v240
      %v367 = vpop.f32.mrf.mxu0
      %v368 = vadd.f32 %v339, %v367
      %369 = vmatmul.f32.gmra.mxu0 %v244
      %v370 = vpop.f32.mrf.mxu0
      %v371 = vadd.f32 %v342, %v370
      %372 = vdwg.mxu0
      %373 = vmatpush.msra.mxu0 %v294
      %374 = vmatpush.msra.mxu0 %v293
      %375 = vmatpush.msra.mxu0 %v292
      %376 = vmatpush.msra.mxu0 %v291
      %377 = vmatpush.msra.mxu0 %v290
      %378 = vmatpush.msra.mxu0 %v289
      %379 = vmatpush.msra.mxu0 %v288
      %380 = vmatpush.msra.mxu0 %v287
      %381 = vmatpush.msra.mxu0 %v286
      %382 = vmatpush.msra.mxu0 %v285
      %383 = vmatpush.msra.mxu0 %v284
      %384 = vmatpush.msra.mxu0 %v283
      %385 = vmatpush.msra.mxu0 %v282
      %386 = vmatpush.msra.mxu0 %v281
      %387 = vmatpush.msra.mxu0 %v280
      %388 = vmatpush.msra.mxu0 %v279
      %389 = vmatmul.f32.gmra.mxu0 %v233
      %v390 = vpop.f32.mrf.mxu0
      %v391 = vadd.f32 %v362, %v390
      %392 = vmatmul.f32.gmra.mxu0 %v237
      %v393 = vpop.f32.mrf.mxu0
      %v394 = vadd.f32 %v365, %v393
      %395 = vmatmul.f32.gmra.mxu0 %v241
      %v396 = vpop.f32.mrf.mxu0
      %v397 = vadd.f32 %v368, %v396
      %398 = vmatmul.f32.gmra.mxu0 %v245
      %v399 = vpop.f32.mrf.mxu0
      %v400 = vadd.f32 %v371, %v399
      %401 = vdwg.mxu0
      %402 = vmatpush.msra.mxu0 %v310
      %403 = vmatpush.msra.mxu0 %v309
      %404 = vmatpush.msra.mxu0 %v308
      %405 = vmatpush.msra.mxu0 %v307
      %406 = vmatpush.msra.mxu0 %v306
      %407 = vmatpush.msra.mxu0 %v305
      %408 = vmatpush.msra.mxu0 %v304
      %409 = vmatpush.msra.mxu0 %v303
      %410 = vmatpush.msra.mxu0 %v302
      %411 = vmatpush.msra.mxu0 %v301
      %412 = vmatpush.msra.mxu0 %v300
      %413 = vmatpush.msra.mxu0 %v299
      %414 = vmatpush.msra.mxu0 %v298
      %415 = vmatpush.msra.mxu0 %v297
      %416 = vmatpush.msra.mxu0 %v296
      %417 = vmatpush.msra.mxu0 %v295
      %418 = vmatmul.f32.gmra.mxu0 %v234
      %v419 = vpop.f32.mrf.mxu0
      %v420 = vadd.f32 %v391, %v419
      %421 = vmatmul.f32.gmra.mxu0 %v238
      %v422 = vpop.f32.mrf.mxu0
      %v423 = vadd.f32 %v394, %v422
      %424 = vmatmul.f32.gmra.mxu0 %v242
      %v425 = vpop.f32.mrf.mxu0
      %v426 = vadd.f32 %v397, %v425
      %427 = vmatmul.f32.gmra.mxu0 %v246
      %v428 = vpop.f32.mrf.mxu0
      %v429 = vadd.f32 %v400, %v428
      %430 = vdwg.mxu0
      %v431 = vtanh.pop %v420
      %v432 = vtanh.pop %v423
      %v433 = vtanh.pop %v426
      %v434 = vtanh.pop %v429
      %v435 = vld [vmem:[%s3] sm:$0xff]
      %v436 = vld [vmem:[%s3 + $0x8] sm:$0xff]
      %v437 = vld [vmem:[%s3 + $0x10] sm:$0xff]
      %v438 = vld [vmem:[%s3 + $0x18] sm:$0xff]
      %v439 = vld [vmem:[%s4] sm:$0x1]
      %v441 = vperm.slane %v439, 0
      %vm443 = vcmask 261120
      %v445 = vsel %vm443, %v431, 0
      %v448 = vsel %vm443, %v432, 0
      %v451 = vsel %vm443, %v433, 0
      %v454 = vsel %vm443, %v434, 0
      %456 = vmatpush.msra.mxu0 0.0
      %457 = vmatpush.msra.mxu0 0.0
      %458 = vmatpush.msra.mxu0 0.0
      %459 = vmatpush.msra.mxu0 0.0
      %460 = vmatpush.msra.mxu0 0.0
      %461 = vmatpush.msra.mxu0 0.0
      %462 = vmatpush.msra.mxu0 0.0
      %463 = vmatpush.msra.mxu0 0.0
      %464 = vmatpush.msra.mxu0 0.0
      %465 = vmatpush.msra.mxu0 0.0
      %466 = vmatpush.msra.mxu0 0.0
      %467 = vmatpush.msra.mxu0 0.0
      %468 = vmatpush.msra.mxu0 %v438
      %469 = vmatpush.msra.mxu0 %v437
      %470 = vmatpush.msra.mxu0 %v436
      %471 = vmatpush.msra.mxu0 %v435
      %472 = vmatmul.f32.gmra.mxu0 %v445
      %v473 = vpop.f32.mrf.mxu0
      %v474 = vadd.f32 %v441, %v473
      %475 = vmatmul.f32.gmra.mxu0 %v448
      %v476 = vpop.f32.mrf.mxu0
      %v477 = vadd.f32 %v441, %v476
      %478 = vmatmul.f32.gmra.mxu0 %v451
      %v479 = vpop.f32.mrf.mxu0
      %v480 = vadd.f32 %v441, %v479
      %481 = vmatmul.f32.gmra.mxu0 %v454
      %v482 = vpop.f32.mrf.mxu0
      %v483 = vadd.f32 %v441, %v482
      %484 = vdwg.mxu0
      %vm485 = vcmask 130048
      %486 = vst.msk [vmem:[%s229] sm:$0xff] %vm485, %v474
      %487 = vst.msk [vmem:[%s229 + $0x8] sm:$0xff] %vm485, %v477
      %488 = vst.msk [vmem:[%s229 + $0x10] sm:$0xff] %vm485, %v480
      %489 = vst.msk [vmem:[%s229 + $0x18] sm:$0xff] %vm485, %v483
      %s490 = smul.u32 4, %s16
      %p491 = scmp.lt.s32.totalorder %s490, 7
      %s492 = scalar_select %p491, %s490, 7
      %s493 = smul.addr %s492, 8
      %s494 = scalar_lea.vmem %s5, %s493
      // Predicated region
      $region41: #{tpu_custom_call.1} parent=39 // pred_check
        %p495 = pneg %p144
      $region42: #{tpu_custom_call.1} parent=39 // pred_check_branch
        %497 = sbr.rel (%p495) target = $region44
      $region43: #{tpu_custom_call.1} parent=39 // pred_region
        %s498 = smul.u32 4, %s16
      $region44: #{tpu_custom_call.1} parent=39 // pred_fallthru
        _
    $region40: #{tpu_custom_call.1} parent=5 // pred_fallthru
      _
    %p499 = scmp.le.s32.totalorder 2, %s11
    // Predicated region
    $region45: #{tpu_custom_call.1} parent=5 // pred_check
      %p500 = pneg %p499
    $region46: #{tpu_custom_call.1} parent=5 // pred_check_branch
      %502 = sbr.rel (%p500) target = $region48
    $region47: #{tpu_custom_call.1} parent=5 // pred_region
      %s503 = ssub.s32 %s11, 2
      // Predicated region
      $region49: #{tpu_custom_call.1} parent=47 // pred_check
        %p504 = pneg %p150
      $region50: #{tpu_custom_call.1} parent=47 // pred_check_branch
        %506 = sbr.rel (%p504) target = $region52
      $region51: #{tpu_custom_call.1} parent=47 // pred_region
        %s507 = smul.u32 4, %s17
        %p508 = scmp.lt.s32.totalorder %s507, 7
        %s509 = scalar_select %p508, %s507, 7
        %s510 = smul.addr %s509, 8
        %s511 = scalar_lea.vmem %s5, %s510
      $region52: #{tpu_custom_call.1} parent=47 // pred_fallthru
        _
    $region48: #{tpu_custom_call.1} parent=5 // pred_fallthru
      _
  $region6: #{tpu_custom_call.1} parent=0 // loop_footer
    %s15 = sadd.s32 1, %s11
  $region7: #{tpu_custom_call.1} parent=0 // loop_footer_branch
    %10 = sbr.rel target = $region3
  $region8: #{tpu_custom_call.1} parent=0 // loop_exit
    _

</llo_original>
